<compile_context>
chip_gen: v6e
topology: v6e:2x2x1
jax: 0.10.0
libtpu: 0.0.40
codegen_flags: <defaults>
</compile_context>

<pallas_src>
import jax
import jax.numpy as jnp
from jax.experimental import pallas as pl
from jax.experimental.pallas import tpu as pltpu

# Module hyper-parameters (small, consistent with the PyTorch module)
DIM = 32                    # dim
MULT = 4                    # mult
HIDDEN = DIM * MULT         # 128  (GEGLU output width / second linear input)
HIDDEN2 = 2 * HIDDEN        # 256  (first linear output width)
BATCH = 2
SEQ = 8
LANE = 128                  # TPU lane width

_INV_SQRT2 = 0.7071067811865476


def _erf_poly(z):
    """Abramowitz & Stegun 7.1.26 rational approximation of erf, |error| <= 1.5e-7."""
    a1, a2, a3, a4, a5 = 0.254829592, -0.284496736, 1.421413741, -1.453152027, 1.061405429
    p = 0.3275911
    sign = jnp.where(z >= 0.0, 1.0, -1.0)
    az = jnp.abs(z)
    t = 1.0 / (1.0 + p * az)
    poly = ((((a5 * t + a4) * t + a3) * t + a2) * t + a1) * t
    return sign * (1.0 - poly * jnp.exp(-az * az))


def _gelu_exact(x):
    # Matches torch.nn.functional.gelu default (erf form) to ~1e-7.
    return 0.5 * x * (1.0 + _erf_poly(x * _INV_SQRT2))


def _ffn_kernel(x_ref, w1_ref, b1_ref, w2_ref, b2_ref, out_ref):
    """Single-step FeedForward.

    x_ref   : (M, D)        VMEM   (M = B*N rows, batch folded)
    w1_ref  : (D, 2*H)      VMEM
    b1_ref  : (1, 2*H)      VMEM
    w2_ref  : (H, OUT_W)    VMEM   (columns zero-padded to a lane multiple)
    b2_ref  : (1, OUT_W)    VMEM
    out_ref : (M, OUT_W)    VMEM   (lane-dense, unmasked stores)
    """
    x = x_ref[...]                                                          # (M, D)

    # First projection: (M, D) @ (D, 2H) on the MXU, f32 accumulation.
    h = jnp.dot(x, w1_ref[...], preferred_element_type=jnp.float32) + b1_ref[...]

    # GEGLU: chunk(2, dim=-1) -> a * gelu(gates). Both halves are 128-lane-aligned.
    half = h.shape[-1] // 2
    a = h[:, :half]
    g = h[:, half:]
    gated = a * _gelu_exact(g)                                              # (M, H)

    # Dropout p=0.0 -> identity (forward semantics).

    # Second projection at full lane width (weights pre-padded) -> lane-dense store.
    out = jnp.dot(gated, w2_ref[...], preferred_element_type=jnp.float32) + b2_ref[...]
    out_ref[...] = out.astype(out_ref.dtype)


def _feed_forward_impl(x, w1, b1, w2, b2):
    B, N, D = x.shape
    M = B * N
    H2 = w1.shape[1]
    H = H2 // 2
    out_w = max(LANE, ((D + LANE - 1) // LANE) * LANE)   # pad projection width to lane multiple

    # Layout plumbing (fused into the same jit as the kernel call; runs once per call).
    x2d = x.reshape(M, D)
    b1_2d = b1.reshape(1, H2)
    w2_p = jnp.zeros((H, out_w), w2.dtype).at[:, :D].set(w2)
    b2_p = jnp.zeros((1, out_w), b2.dtype).at[:, :D].set(b2)

    grid_spec = pltpu.PrefetchScalarGridSpec(
        num_scalar_prefetch=0,
        grid=(1,),                                       # whole problem in one grid step
        in_specs=[
            pl.BlockSpec((M, D), lambda i: (0, 0)),
            pl.BlockSpec((D, H2), lambda i: (0, 0)),
            pl.BlockSpec((1, H2), lambda i: (0, 0)),
            pl.BlockSpec((H, out_w), lambda i: (0, 0)),
            pl.BlockSpec((1, out_w), lambda i: (0, 0)),
        ],
        out_specs=pl.BlockSpec((M, out_w), lambda i: (0, 0)),
    )

    out_p = pl.pallas_call(
        _ffn_kernel,
        out_shape=jax.ShapeDtypeStruct((M, out_w), jnp.float32),
        grid_spec=grid_spec,
        compiler_params=pltpu.CompilerParams(
            dimension_semantics=("arbitrary",)),
    )(x2d, w1, b1_2d, w2_p, b2_p)

    # Slice away the lane padding and restore (B, N, D).
    return out_p[:, :D].reshape(B, N, D)


feed_forward_pallas = jax.jit(_feed_forward_impl)


def feed_forward_ref(x, w1, b1, w2, b2):
    """Pure-JAX reference reproducing the PyTorch forward (exact-erf GELU)."""
    h = x @ w1 + b1
    a, g = jnp.split(h, 2, axis=-1)
    return (a * jax.nn.gelu(g, approximate=False)) @ w2 + b2


if __name__ == "__main__":
    key = jax.random.PRNGKey(0)
    k_x, k_w1, k_b1, k_w2, k_b2 = jax.random.split(key, 5)

    # Deterministic parameter init (uniform, PyTorch-like fan-in scaling).
    bound1 = 1.0 / (DIM ** 0.5)
    bound2 = 1.0 / (HIDDEN ** 0.5)
    x = jax.random.normal(k_x, (BATCH, SEQ, DIM), dtype=jnp.float32)
    w1 = jax.random.uniform(k_w1, (DIM, HIDDEN2), jnp.float32, minval=-bound1, maxval=bound1)
    b1 = jax.random.uniform(k_b1, (HIDDEN2,), jnp.float32, minval=-bound1, maxval=bound1)
    w2 = jax.random.uniform(k_w2, (HIDDEN, DIM), jnp.float32, minval=-bound2, maxval=bound2)
    b2 = jax.random.uniform(k_b2, (DIM,), jnp.float32, minval=-bound2, maxval=bound2)

    out = feed_forward_pallas(x, w1, b1, w2, b2)
    jax.block_until_ready(out)

    out_r = feed_forward_ref(x, w1, b1, w2, b2)
    assert out.shape == (BATCH, SEQ, DIM)
    assert jnp.allclose(out, out_r, atol=1e-4, rtol=1e-4)

    print("KERNEL_OK")
</pallas_src>

<mosaic_0001>
module attributes {stable_mosaic.version = 11 : i64} {
  func.func @_ffn_kernel(%arg0: i32, %arg1: memref<16x32xf32, #tpu.memory_space<vmem>>, %arg2: memref<32x256xf32, #tpu.memory_space<vmem>>, %arg3: memref<1x256xf32, #tpu.memory_space<vmem>>, %arg4: memref<128x128xf32, #tpu.memory_space<vmem>>, %arg5: memref<1x128xf32, #tpu.memory_space<vmem>>, %arg6: memref<16x128xf32, #tpu.memory_space<vmem>>) attributes {dimension_semantics = [#tpu.dimension_semantics<arbitrary>], iteration_bounds = array<i64: 1>, scalar_prefetch = 0 : i64, scratch_operands = 0 : i64, tpu.core_type = #tpu.core_type<tc>, window_params = [{pipeline_mode = #tpu.pipeline_mode<synchronous>, transform_indices = @transform_0, window_bounds = array<i64: 16, 32>}, {pipeline_mode = #tpu.pipeline_mode<synchronous>, transform_indices = @transform_1, window_bounds = array<i64: 32, 256>}, {pipeline_mode = #tpu.pipeline_mode<synchronous>, transform_indices = @transform_2, window_bounds = array<i64: 1, 256>}, {pipeline_mode = #tpu.pipeline_mode<synchronous>, transform_indices = @transform_3, window_bounds = array<i64: 128, 128>}, {pipeline_mode = #tpu.pipeline_mode<synchronous>, transform_indices = @transform_4, window_bounds = array<i64: 1, 128>}, {pipeline_mode = #tpu.pipeline_mode<synchronous>, transform_indices = @transform_5, window_bounds = array<i64: 16, 128>}]} {
    %c0 = arith.constant 0 : index
    %c0_0 = arith.constant 0 : index
    %0 = vector.load %arg1[%c0, %c0_0] : memref<16x32xf32, #tpu.memory_space<vmem>>, vector<16x32xf32>
    %c0_1 = arith.constant 0 : index
    %c0_2 = arith.constant 0 : index
    %1 = vector.load %arg2[%c0_1, %c0_2] : memref<32x256xf32, #tpu.memory_space<vmem>>, vector<32x256xf32>
    %cst = arith.constant dense<0.000000e+00> : vector<16x256xf32>
    %2 = tpu.matmul %0, %1, %cst {dimension_numbers = #tpu.dot_dimension_numbers<[1], [0], [0], [1], [0, 0, 1, 1], [], []>} : vector<16x32xf32>, vector<32x256xf32>, vector<16x256xf32> -> vector<16x256xf32>
    %c0_3 = arith.constant 0 : index
    %c0_4 = arith.constant 0 : index
    %3 = vector.load %arg3[%c0_3, %c0_4] : memref<1x256xf32, #tpu.memory_space<vmem>>, vector<1x256xf32>
    %4 = vector.broadcast %3 : vector<1x256xf32> to vector<16x256xf32>
    %5 = arith.addf %2, %4 : vector<16x256xf32>
    %6 = vector.extract_strided_slice %5 {offsets = [0, 0], sizes = [16, 128], strides = [1, 1]} : vector<16x256xf32> to vector<16x128xf32>
    %7 = vector.extract_strided_slice %5 {offsets = [0, 128], sizes = [16, 128], strides = [1, 1]} : vector<16x256xf32> to vector<16x128xf32>
    %cst_5 = arith.constant 5.000000e-01 : f32
    %8 = vector.broadcast %cst_5 : f32 to vector<16x128xf32>
    %9 = arith.mulf %8, %7 : vector<16x128xf32>
    %cst_6 = arith.constant 0.707106769 : f32
    %10 = vector.broadcast %cst_6 : f32 to vector<16x128xf32>
    %11 = arith.mulf %7, %10 : vector<16x128xf32>
    %cst_7 = arith.constant 0.000000e+00 : f32
    %12 = vector.broadcast %cst_7 : f32 to vector<16x128xf32>
    %13 = arith.cmpf oge, %11, %12 : vector<16x128xf32>
    %cst_8 = arith.constant 1.000000e+00 : f32
    %cst_9 = arith.constant -1.000000e+00 : f32
    %14 = vector.broadcast %cst_8 : f32 to vector<16x128xf32>
    %15 = vector.broadcast %cst_9 : f32 to vector<16x128xf32>
    %16 = arith.select %13, %14, %15 : vector<16x128xi1>, vector<16x128xf32>
    %17 = math.absf %11 : vector<16x128xf32>
    %cst_10 = arith.constant 0.327591091 : f32
    %18 = vector.broadcast %cst_10 : f32 to vector<16x128xf32>
    %19 = arith.mulf %18, %17 : vector<16x128xf32>
    %cst_11 = arith.constant 1.000000e+00 : f32
    %20 = vector.broadcast %cst_11 : f32 to vector<16x128xf32>
    %21 = arith.addf %20, %19 : vector<16x128xf32>
    %cst_12 = arith.constant 1.000000e+00 : f32
    %22 = vector.broadcast %cst_12 : f32 to vector<16x128xf32>
    %23 = arith.divf %22, %21 : vector<16x128xf32>
    %cst_13 = arith.constant 1.06140542 : f32
    %24 = vector.broadcast %cst_13 : f32 to vector<16x128xf32>
    %25 = arith.mulf %24, %23 : vector<16x128xf32>
    %cst_14 = arith.constant -1.45315206 : f32
    %26 = vector.broadcast %cst_14 : f32 to vector<16x128xf32>
    %27 = arith.addf %25, %26 : vector<16x128xf32>
    %28 = arith.mulf %27, %23 : vector<16x128xf32>
    %cst_15 = arith.constant 1.42141378 : f32
    %29 = vector.broadcast %cst_15 : f32 to vector<16x128xf32>
    %30 = arith.addf %28, %29 : vector<16x128xf32>
    %31 = arith.mulf %30, %23 : vector<16x128xf32>
    %cst_16 = arith.constant -0.284496725 : f32
    %32 = vector.broadcast %cst_16 : f32 to vector<16x128xf32>
    %33 = arith.addf %31, %32 : vector<16x128xf32>
    %34 = arith.mulf %33, %23 : vector<16x128xf32>
    %cst_17 = arith.constant 0.254829586 : f32
    %35 = vector.broadcast %cst_17 : f32 to vector<16x128xf32>
    %36 = arith.addf %34, %35 : vector<16x128xf32>
    %37 = arith.mulf %36, %23 : vector<16x128xf32>
    %cst_18 = arith.constant 0.000000e+00 : f32
    %38 = vector.broadcast %cst_18 : f32 to vector<16x128xf32>
    %39 = arith.subf %38, %17 : vector<16x128xf32>
    %40 = arith.mulf %39, %17 : vector<16x128xf32>
    %41 = math.exp %40 : vector<16x128xf32>
    %42 = arith.mulf %37, %41 : vector<16x128xf32>
    %cst_19 = arith.constant 1.000000e+00 : f32
    %43 = vector.broadcast %cst_19 : f32 to vector<16x128xf32>
    %44 = arith.subf %43, %42 : vector<16x128xf32>
    %45 = arith.mulf %16, %44 : vector<16x128xf32>
    %cst_20 = arith.constant 1.000000e+00 : f32
    %46 = vector.broadcast %cst_20 : f32 to vector<16x128xf32>
    %47 = arith.addf %46, %45 : vector<16x128xf32>
    %48 = arith.mulf %9, %47 : vector<16x128xf32>
    %49 = arith.mulf %6, %48 : vector<16x128xf32>
    %c0_21 = arith.constant 0 : index
    %c0_22 = arith.constant 0 : index
    %50 = vector.load %arg4[%c0_21, %c0_22] : memref<128x128xf32, #tpu.memory_space<vmem>>, vector<128x128xf32>
    %cst_23 = arith.constant dense<0.000000e+00> : vector<16x128xf32>
    %51 = tpu.matmul %49, %50, %cst_23 {dimension_numbers = #tpu.dot_dimension_numbers<[1], [0], [0], [1], [0, 0, 1, 1], [], []>} : vector<16x128xf32>, vector<128x128xf32>, vector<16x128xf32> -> vector<16x128xf32>
    %c0_24 = arith.constant 0 : index
    %c0_25 = arith.constant 0 : index
    %52 = vector.load %arg5[%c0_24, %c0_25] : memref<1x128xf32, #tpu.memory_space<vmem>>, vector<1x128xf32>
    %53 = vector.broadcast %52 : vector<1x128xf32> to vector<16x128xf32>
    %54 = arith.addf %51, %53 : vector<16x128xf32>
    %c0_26 = arith.constant 0 : index
    %c0_27 = arith.constant 0 : index
    %55 = vector.load %arg6[%c0_26, %c0_27] : memref<16x128xf32, #tpu.memory_space<vmem>>, vector<16x128xf32>
    tpu.vector_store %arg6[%c0_26, %c0_27], %54 {strides = array<i32>} : memref<16x128xf32, #tpu.memory_space<vmem>>, vector<16x128xf32>,
    return
  }
  func.func @transform_0(%arg0: i32) -> (i32, i32) {
    %c0_i32 = arith.constant 0 : i32
    %c0_i32_0 = arith.constant 0 : i32
    %c0_i32_1 = arith.constant 0 : i32
    return %c0_i32, %c0_i32_0 : i32, i32
  }
  func.func @transform_1(%arg0: i32) -> (i32, i32) {
    %c0_i32 = arith.constant 0 : i32
    %c0_i32_0 = arith.constant 0 : i32
    %c0_i32_1 = arith.constant 0 : i32
    return %c0_i32, %c0_i32_0 : i32, i32
  }
  func.func @transform_2(%arg0: i32) -> (i32, i32) {
    %c0_i32 = arith.constant 0 : i32
    %c0_i32_0 = arith.constant 0 : i32
    %c0_i32_1 = arith.constant 0 : i32
    return %c0_i32, %c0_i32_0 : i32, i32
  }
  func.func @transform_3(%arg0: i32) -> (i32, i32) {
    %c0_i32 = arith.constant 0 : i32
    %c0_i32_0 = arith.constant 0 : i32
    %c0_i32_1 = arith.constant 0 : i32
    return %c0_i32, %c0_i32_0 : i32, i32
  }
  func.func @transform_4(%arg0: i32) -> (i32, i32) {
    %c0_i32 = arith.constant 0 : i32
    %c0_i32_0 = arith.constant 0 : i32
    %c0_i32_1 = arith.constant 0 : i32
    return %c0_i32, %c0_i32_0 : i32, i32
  }
  func.func @transform_5(%arg0: i32) -> (i32, i32) {
    %c0_i32 = arith.constant 0 : i32
    %c0_i32_0 = arith.constant 0 : i32
    %c0_i32_1 = arith.constant 0 : i32
    return %c0_i32, %c0_i32_0 : i32, i32
  }
}

</mosaic_0001>

<llo_original>
// kernel: _feed_forward_impl.1
$region0: #{_feed_forward_impl.1}
  #allocation0 [shape = 'u32[]', space=smem, size = 0x4, offset = 0x4, fixed_abs, tag = 'smem constant byte address 0x4 - core index']
  #allocation1 [shape = 'u32[144,128]{1,0:T(1,128)}', space=vmem, size = 0x12000, scoped, tag = 'internal scratch']
  %s0 = inlined_call_operand.vmem [shape: f32[16,32], index: 0, kind: input, shape index: {}]
  %s1 = inlined_call_operand.vmem [shape: f32[32,256], index: 1, kind: input, shape index: {}]
  %s2 = inlined_call_operand.vmem [shape: f32[1,256], index: 2, kind: input, shape index: {}]
  %s3 = inlined_call_operand.vmem [shape: f32[128,128], index: 3, kind: input, shape index: {}]
  %s4 = inlined_call_operand.vmem [shape: f32[1,128], index: 4, kind: input, shape index: {}]
  %s5 = inlined_call_operand.vmem [shape: f32[16,128], index: 5, kind: output, shape index: {}]
  %s6 = sld [smem:[#allocation0]]
  $region30: #{_feed_forward_impl.1} parent=0
    _
  %s8 = ssub.s32 1, %s6
  %s9 = scalar_select 0, %s8, %s6
  // Predicated region
  $region2: #{_feed_forward_impl.1} parent=0 // pred_check
    _
  $region3: #{_feed_forward_impl.1} parent=0 // pred_check_branch
    %11 = sbr.rel (0) target = $region5
  $region4: #{_feed_forward_impl.1} parent=0 // pred_region
    _
  $region5: #{_feed_forward_impl.1} parent=0 // pred_fallthru
    _
  // Predicated region
  $region6: #{_feed_forward_impl.1} parent=0 // pred_check
    _
  $region7: #{_feed_forward_impl.1} parent=0 // pred_check_branch
    %13 = sbr.rel (0) target = $region9
  $region8: #{_feed_forward_impl.1} parent=0 // pred_region
    _
  $region9: #{_feed_forward_impl.1} parent=0 // pred_fallthru
    _
  // Predicated region
  $region10: #{_feed_forward_impl.1} parent=0 // pred_check
    _
  $region11: #{_feed_forward_impl.1} parent=0 // pred_check_branch
    %15 = sbr.rel (0) target = $region13
  $region12: #{_feed_forward_impl.1} parent=0 // pred_region
    _
  $region13: #{_feed_forward_impl.1} parent=0 // pred_fallthru
    _
  // Predicated region
  $region14: #{_feed_forward_impl.1} parent=0 // pred_check
    _
  $region15: #{_feed_forward_impl.1} parent=0 // pred_check_branch
    %17 = sbr.rel (0) target = $region17
  $region16: #{_feed_forward_impl.1} parent=0 // pred_region
    _
  $region17: #{_feed_forward_impl.1} parent=0 // pred_fallthru
    _
  // Predicated region
  $region18: #{_feed_forward_impl.1} parent=0 // pred_check
    _
  $region19: #{_feed_forward_impl.1} parent=0 // pred_check_branch
    %19 = sbr.rel (0) target = $region21
  $region20: #{_feed_forward_impl.1} parent=0 // pred_region
    _
  $region21: #{_feed_forward_impl.1} parent=0 // pred_fallthru
    _
  %v20 = vld [vmem:[%s0] sm:$0xff]
  %v21 = vld [vmem:[%s0 + $0x8] sm:$0xff]
  %v22 = vld [vmem:[%s1] sm:$0xff]
  %v23 = vld [vmem:[%s1 + $0x8] sm:$0xff]
  %v24 = vld [vmem:[%s1 + $0x10] sm:$0xff]
  %v25 = vld [vmem:[%s1 + $0x18] sm:$0xff]
  %v26 = vld [vmem:[%s1 + $0x20] sm:$0xff]
  %v27 = vld [vmem:[%s1 + $0x28] sm:$0xff]
  %v28 = vld [vmem:[%s1 + $0x30] sm:$0xff]
  %v29 = vld [vmem:[%s1 + $0x38] sm:$0xff]
  %v30 = vld [vmem:[%s2] sm:$0x3]
  %v32 = vlaneseq
  %v33 = vshrl.u32 %v32, 7
  %v34 = vsub.s32 0, %v33
  %v35 = vrot.slane %v30, %v34
  %v36 = vlaneseq
  %v37 = vshrl.u32 %v36, 7
  %v38 = vsub.s32 1, %v37
  %v39 = vrot.slane %v30, %v38
  %vm42 = vcmask 261120
  %v44 = vsel %vm42, %v20, 0
  %v47 = vsel %vm42, %v21, 0
  %49 = vmatprep.subr.mxu0 0.0
  %50 = vmatpush1.msra.mxu0 0.0
  %51 = vmatprep.subr.mxu0 0.0
  %52 = vmatpush1.msra.mxu0 0.0
  %53 = vmatprep.subr.mxu0 0.0
  %54 = vmatpush1.msra.mxu0 0.0
  %55 = vmatprep.subr.mxu0 0.0
  %56 = vmatpush1.msra.mxu0 0.0
  %57 = vmatprep.subr.mxu0 0.0
  %58 = vmatpush1.msra.mxu0 0.0
  %59 = vmatprep.subr.mxu0 0.0
  %60 = vmatpush1.msra.mxu0 0.0
  %61 = vmatprep.subr.mxu0 0.0
  %62 = vmatpush1.msra.mxu0 0.0
  %63 = vmatprep.subr.mxu0 0.0
  %64 = vmatpush1.msra.mxu0 0.0
  %65 = vmatprep.subr.mxu0 0.0
  %66 = vmatpush1.msra.mxu0 0.0
  %67 = vmatprep.subr.mxu0 0.0
  %68 = vmatpush1.msra.mxu0 0.0
  %69 = vmatprep.subr.mxu0 0.0
  %70 = vmatpush1.msra.mxu0 0.0
  %71 = vmatprep.subr.mxu0 0.0
  %72 = vmatpush1.msra.mxu0 0.0
  %73 = vmatprep.subr.mxu0 %v29
  %74 = vmatpush1.msra.mxu0 %v28
  %75 = vmatprep.subr.mxu0 %v27
  %76 = vmatpush1.msra.mxu0 %v26
  %77 = vmatprep.subr.mxu0 %v25
  %78 = vmatpush1.msra.mxu0 %v24
  %79 = vmatprep.subr.mxu0 %v23
  %80 = vmatpush1.msra.mxu0 %v22
  %81 = vmatprep.subr.mxu0 0.0
  %82 = vmatpush2.msra.mxu0 0.0
  %83 = vmatprep.subr.mxu0 0.0
  %84 = vmatpush2.msra.mxu0 0.0
  %85 = vmatprep.subr.mxu0 0.0
  %86 = vmatpush2.msra.mxu0 0.0
  %87 = vmatprep.subr.mxu0 0.0
  %88 = vmatpush2.msra.mxu0 0.0
  %89 = vmatprep.subr.mxu0 0.0
  %90 = vmatpush2.msra.mxu0 0.0
  %91 = vmatprep.subr.mxu0 0.0
  %92 = vmatpush2.msra.mxu0 0.0
  %93 = vmatprep.subr.mxu0 0.0
  %94 = vmatpush2.msra.mxu0 0.0
  %95 = vmatprep.subr.mxu0 0.0
  %96 = vmatpush2.msra.mxu0 0.0
  %97 = vmatprep.subr.mxu0 0.0
  %98 = vmatpush2.msra.mxu0 0.0
  %99 = vmatprep.subr.mxu0 0.0
  %100 = vmatpush2.msra.mxu0 0.0
  %101 = vmatprep.subr.mxu0 0.0
  %102 = vmatpush2.msra.mxu0 0.0
  %103 = vmatprep.subr.mxu0 0.0
  %104 = vmatpush2.msra.mxu0 0.0
  %105 = vmatprep.subr.mxu0 0.0
  %106 = vmatpush2.msra.mxu0 0.0
  %107 = vmatprep.subr.mxu0 0.0
  %108 = vmatpush2.msra.mxu0 0.0
  %109 = vmatprep.subr.mxu0 0.0
  %110 = vmatpush2.msra.mxu0 0.0
  %111 = vmatprep.subr.mxu0 0.0
  %112 = vmatpush2.msra.mxu0 0.0
  %113 = vmatprep.mubr.f32.mxu0 0.0
  %114 = vmatmul.mubr.f32.gmra.mxu0 %v44
  %v115 = vpop.f32.mrf.mxu0
  %v116 = vadd.f32 %v35, %v115
  %v117 = vpop.f32.mrf.mxu0
  %v118 = vadd.f32 %v39, %v117
  %119 = vmatprep.mubr.f32.mxu0 0.0
  %120 = vmatmul.mubr.f32.gmra.mxu0 %v47
  %v121 = vpop.f32.mrf.mxu0
  %v122 = vadd.f32 %v35, %v121
  %v123 = vpop.f32.mrf.mxu0
  %v124 = vadd.f32 %v39, %v123
  %125 = vdwg.mxu0
  %v126 = vmul.f32 %v118, 0.5
  %v127 = vmul.f32 %v124, 0.5
  %v128 = vmul.f32 %v118, 0.70710677
  %v129 = vmul.f32 %v124, 0.70710677
  %vm130 = vcmp.ge.f32.partialorder %v128, 0.0
  %vm131 = vcmp.ge.f32.partialorder %v129, 0.0
  %v132 = vsel %vm130, 1.0, -1.0
  %v133 = vsel %vm131, 1.0, -1.0
  %v134 = vand.u32 2147483647, %v128
  %v135 = vand.u32 2147483647, %v129
  %v136 = vmul.f32 %v134, 0.3275911
  %v137 = vmul.f32 %v135, 0.3275911
  %v138 = vadd.f32 %v136, 1.0
  %v139 = vadd.f32 %v137, 1.0
  %v140 = vrcp.pop %v138
  %v141 = vmul.f32 1.0, %v140
  %v142 = vrcp.pop %v139
  %v143 = vmul.f32 1.0, %v142
  %v144 = vmul.f32 %v141, 1.0614054
  %v145 = vmul.f32 %v143, 1.0614054
  %v146 = vadd.f32 %v144, -1.4531521
  %v147 = vadd.f32 %v145, -1.4531521
  %v148 = vmul.f32 %v146, %v141
  %v149 = vmul.f32 %v147, %v143
  %v150 = vadd.f32 %v148, 1.4214138
  %v151 = vadd.f32 %v149, 1.4214138
  %v152 = vmul.f32 %v150, %v141
  %v153 = vmul.f32 %v151, %v143
  %v154 = vadd.f32 %v152, -0.28449672
  %v155 = vadd.f32 %v153, -0.28449672
  %v156 = vmul.f32 %v154, %v141
  %v157 = vmul.f32 %v155, %v143
  %v158 = vadd.f32 %v156, 0.2548296
  %v159 = vadd.f32 %v157, 0.2548296
  %v160 = vmul.f32 %v158, %v141
  %v161 = vmul.f32 %v159, %v143
  %v162 = vsub.f32 0.0, %v134
  %v163 = vsub.f32 0.0, %v135
  %v164 = vmul.f32 %v162, %v134
  %v165 = vmul.f32 %v163, %v135
  %v166 = vmul.f32 %v164, 1.442695
  %v167 = vpow.pop %v166
  %v168 = vmul.f32 %v165, 1.442695
  %v169 = vpow.pop %v168
  %v170 = vmul.f32 %v160, %v167
  %v171 = vmul.f32 %v161, %v169
  %v172 = vsub.f32 1.0, %v170
  %v173 = vsub.f32 1.0, %v171
  %v174 = vmul.f32 %v132, %v172
  %v175 = vmul.f32 %v133, %v173
  %v176 = vadd.f32 %v174, 1.0
  %v177 = vadd.f32 %v175, 1.0
  %v178 = vmul.f32 %v126, %v176
  %v179 = vmul.f32 %v127, %v177
  %v180 = vmul.f32 %v116, %v178
  %v181 = vmul.f32 %v122, %v179
  %v182 = vld [vmem:[%s3] sm:$0xff]
  %v183 = vld [vmem:[%s3 + $0x8] sm:$0xff]
  %v184 = vld [vmem:[%s3 + $0x10] sm:$0xff]
  %v185 = vld [vmem:[%s3 + $0x18] sm:$0xff]
  %v186 = vld [vmem:[%s3 + $0x20] sm:$0xff]
  %v187 = vld [vmem:[%s3 + $0x28] sm:$0xff]
  %v188 = vld [vmem:[%s3 + $0x30] sm:$0xff]
  %v189 = vld [vmem:[%s3 + $0x38] sm:$0xff]
  %v190 = vld [vmem:[%s3 + $0x40] sm:$0xff]
  %v191 = vld [vmem:[%s3 + $0x48] sm:$0xff]
  %v192 = vld [vmem:[%s3 + $0x50] sm:$0xff]
  %v193 = vld [vmem:[%s3 + $0x58] sm:$0xff]
  %v194 = vld [vmem:[%s3 + $0x60] sm:$0xff]
  %v195 = vld [vmem:[%s3 + $0x68] sm:$0xff]
  %v196 = vld [vmem:[%s3 + $0x70] sm:$0xff]
  %v197 = vld [vmem:[%s3 + $0x78] sm:$0xff]
  %v198 = vld [vmem:[%s4] sm:$0x1]
  %v200 = vlaneseq
  %v201 = vshrl.u32 %v200, 7
  %v202 = vsub.s32 0, %v201
  %v203 = vrot.slane %v198, %v202
  %205 = vmatprep.subr.mxu0 0.0
  %206 = vmatpush1.msra.mxu0 %v197
  %207 = vmatprep.subr.mxu0 0.0
  %208 = vmatpush1.msra.mxu0 %v196
  %209 = vmatprep.subr.mxu0 0.0
  %210 = vmatpush1.msra.mxu0 %v195
  %211 = vmatprep.subr.mxu0 0.0
  %212 = vmatpush1.msra.mxu0 %v194
  %213 = vmatprep.subr.mxu0 0.0
  %214 = vmatpush1.msra.mxu0 %v193
  %215 = vmatprep.subr.mxu0 0.0
  %216 = vmatpush1.msra.mxu0 %v192
  %217 = vmatprep.subr.mxu0 0.0
  %218 = vmatpush1.msra.mxu0 %v191
  %219 = vmatprep.subr.mxu0 0.0
  %220 = vmatpush1.msra.mxu0 %v190
  %221 = vmatprep.subr.mxu0 0.0
  %222 = vmatpush1.msra.mxu0 %v189
  %223 = vmatprep.subr.mxu0 0.0
  %224 = vmatpush1.msra.mxu0 %v188
  %225 = vmatprep.subr.mxu0 0.0
  %226 = vmatpush1.msra.mxu0 %v187
  %227 = vmatprep.subr.mxu0 0.0
  %228 = vmatpush1.msra.mxu0 %v186
  %229 = vmatprep.subr.mxu0 0.0
  %230 = vmatpush1.msra.mxu0 %v185
  %231 = vmatprep.subr.mxu0 0.0
  %232 = vmatpush1.msra.mxu0 %v184
  %233 = vmatprep.subr.mxu0 0.0
  %234 = vmatpush1.msra.mxu0 %v183
  %235 = vmatprep.subr.mxu0 0.0
  %236 = vmatpush1.msra.mxu0 %v182
  %237 = vmatprep.subr.mxu0 0.0
  %238 = vmatpush2.msra.mxu0 0.0
  %239 = vmatprep.subr.mxu0 0.0
  %240 = vmatpush2.msra.mxu0 0.0
  %241 = vmatprep.subr.mxu0 0.0
  %242 = vmatpush2.msra.mxu0 0.0
  %243 = vmatprep.subr.mxu0 0.0
  %244 = vmatpush2.msra.mxu0 0.0
  %245 = vmatprep.subr.mxu0 0.0
  %246 = vmatpush2.msra.mxu0 0.0
  %247 = vmatprep.subr.mxu0 0.0
  %248 = vmatpush2.msra.mxu0 0.0
  %249 = vmatprep.subr.mxu0 0.0
  %250 = vmatpush2.msra.mxu0 0.0
  %251 = vmatprep.subr.mxu0 0.0
  %252 = vmatpush2.msra.mxu0 0.0
  %253 = vmatprep.subr.mxu0 0.0
  %254 = vmatpush2.msra.mxu0 0.0
  %255 = vmatprep.subr.mxu0 0.0
  %256 = vmatpush2.msra.mxu0 0.0
  %257 = vmatprep.subr.mxu0 0.0
  %258 = vmatpush2.msra.mxu0 0.0
  %259 = vmatprep.subr.mxu0 0.0
  %260 = vmatpush2.msra.mxu0 0.0
  %261 = vmatprep.subr.mxu0 0.0
  %262 = vmatpush2.msra.mxu0 0.0
  %263 = vmatprep.subr.mxu0 0.0
  %264 = vmatpush2.msra.mxu0 0.0
  %265 = vmatprep.subr.mxu0 0.0
  %266 = vmatpush2.msra.mxu0 0.0
  %267 = vmatprep.subr.mxu0 0.0
  %268 = vmatpush2.msra.mxu0 0.0
  %269 = vmatprep.mubr.f32.mxu0 0.0
  %270 = vmatmul.mubr.f32.gmra.mxu0 %v180
  %v271 = vpop.f32.mrf.mxu0
  %v272 = vadd.f32 %v203, %v271
  %v273 = vpop.f32.mrf.mxu0
  %274 = vmatprep.mubr.f32.mxu0 0.0
  %275 = vmatmul.mubr.f32.gmra.mxu0 %v181
  %v276 = vpop.f32.mrf.mxu0
  %v277 = vadd.f32 %v203, %v276
  %v278 = vpop.f32.mrf.mxu0
  %279 = vdwg.mxu0
  %280 = vst [vmem:[%s5] sm:$0xff] %v272
  %281 = vst [vmem:[%s5 + $0x8] sm:$0xff] %v277
  // Predicated region
  $region22: #{_feed_forward_impl.1} parent=0 // pred_check
    _
  $region23: #{_feed_forward_impl.1} parent=0 // pred_check_branch
    %283 = sbr.rel (0) target = $region25
  $region24: #{_feed_forward_impl.1} parent=0 // pred_region
    _
  $region25: #{_feed_forward_impl.1} parent=0 // pred_fallthru
    _
  // Predicated region
  $region26: #{_feed_forward_impl.1} parent=0 // pred_check
    _
  $region27: #{_feed_forward_impl.1} parent=0 // pred_check_branch
    %285 = sbr.rel (0) target = $region29
  $region28: #{_feed_forward_impl.1} parent=0 // pred_region
    _
  $region29: #{_feed_forward_impl.1} parent=0 // pred_fallthru
    _

</llo_original>
